<compile_context>
chip_gen: v7x
topology: tpu7x:2x2x1
jax: 0.10.0
libtpu: 0.0.40
codegen_flags: <defaults>
</compile_context>

<pallas_src>
import jax
import jax.numpy as jnp
from jax import lax
from jax.experimental import pallas as pl
from jax.experimental.pallas import tpu as pltpu

K = 5            # conv kernel size (ColorizerModel k=5)
PAD = K // 2     # 'same' padding
N_LAYERS = 3     # args.colorize = 3 -> Conv(1->3), Conv(3->3), Conv(3->3)
EMB = 32         # synthetic encoder embedding size


# --------------------------------------------------------------------------
# Pallas kernel: one MXU dot per batch tile, batch on lanes.
# --------------------------------------------------------------------------
def _affine_kernel(w_ref, b_ref, x_ref, o_ref):
    # (EMB, F) @ (F, Bt) + (EMB, 1)  -> (EMB, Bt), f32 accumulation.
    o_ref[...] = jnp.dot(w_ref[...], x_ref[...],
                         preferred_element_type=jnp.float32) + b_ref[...]


def _affine_matmul(w, b, x_t, *, block_b=256):
    """Returns (x_t.T @ w.T + b.T), i.e. (B, EMB), with the batch tiled over
    the grid and sitting on the lane axis inside each tile.

    w: (EMB, F)  VMEM-resident weight
    b: (EMB, 1)  bias
    x_t: (F, B)  inputs, batch-last (lane axis)
    """
    E, F = w.shape
    B = x_t.shape[1]
    # block_b=256 fills v6e's 256-wide MXU N dimension; for B > block_b the
    # grid gets >= 2 steps so v7x's two TensorCores both get work via the
    # "parallel" axis.  All buffers here are tiny (<< VMEM) so no explicit
    # vmem_limit_bytes is needed.
    bt = min(B, block_b)
    out_t = pl.pallas_call(
        _affine_kernel,
        out_shape=jax.ShapeDtypeStruct((E, B), jnp.float32),
        grid=(pl.cdiv(B, bt),),
        in_specs=[pl.BlockSpec((E, F), lambda i: (0, 0)),   # weight, resident
                  pl.BlockSpec((E, 1), lambda i: (0, 0)),   # bias,   resident
                  pl.BlockSpec((F, bt), lambda i: (0, i))], # batch tile
        out_specs=pl.BlockSpec((E, bt), lambda i: (0, i)),  # lane-dense out
        compiler_params=pltpu.CompilerParams(
            dimension_semantics=("parallel",)),
    )(w, b, x_t)
    return out_t.T


# --------------------------------------------------------------------------
# Parameter folding: compose convs + rgbBase skip + encoder into an affine
# map.  This is parameter-only preprocessing (independent of the batch); in a
# real pipeline it would be cached alongside the weights.
# --------------------------------------------------------------------------
def _conv_same(inp, w, b):
    out = lax.conv_general_dilated(
        inp, w, (1, 1), "SAME",
        dimension_numbers=("NCHW", "OIHW", "NCHW"),
        precision=lax.Precision.HIGHEST)
    return out + b[None, :, None, None]


def _colorize_then_encode(bw, params):
    """Pure-JAX colorizer + flatten + dense encoder (affine in bw)."""
    c = _conv_same(bw, params["w1"], params["b1"])
    c = _conv_same(c, params["w2"], params["b2"])
    c = _conv_same(c, params["w3"], params["b3"])
    rgb = jnp.concatenate([bw, bw, bw], axis=1) + c          # rgbBase + conv
    flat = rgb.reshape(bw.shape[0], -1)                       # NCHW flatten
    return jnp.dot(flat, params["w_enc"],
                   precision=lax.Precision.HIGHEST) + params["b_enc"]


def _fold_affine(params, H, W):
    """Effective (EMB, H*W) weight and (EMB, 1) bias of the whole module.

    Valid because there is no nonlinearity anywhere in the pipeline; probing
    with the identity pixel basis recovers the exact composed linear map.
    """
    HW = H * W
    zero = jnp.zeros((1, 1, H, W), jnp.float32)
    b_eff = _colorize_then_encode(zero, params)                # (1, EMB)
    basis = jnp.eye(HW, dtype=jnp.float32).reshape(HW, 1, H, W)
    m = _colorize_then_encode(basis, params) - b_eff           # (HW, EMB)
    return m.T, b_eff.T                                        # (EMB,HW),(EMB,1)


# --------------------------------------------------------------------------
# Forward pass (mirrors TileClassifierEncoder.forward).
# --------------------------------------------------------------------------
def tile_classifier_encoder_forward(x, params, colorize=N_LAYERS, block_b=256):
    B, C, H, W = x.shape
    if not colorize:
        # TODO(synk): the timm pretrained backbone from getModel() cannot be
        # reproduced in-script; a synthetic flatten + dense encoder preserves
        # only the (B, embSize) output contract, not backbone numerics.
        x_flat = x.reshape(B, -1).astype(jnp.float32)
        return _affine_matmul(params["w_enc"].T, params["b_enc"].T,
                              x_flat.T, block_b=block_b)

    c0 = 1 if C == 3 else 0                 # x = x[:, 1:2] on 3-channel input
    # Batch -> lane axis: (H*W, B) is the natural RHS of the folded matmul.
    bw_t = x[:, c0, :, :].reshape(B, H * W).T.astype(jnp.float32)
    w_eff, b_eff = _fold_affine(params, H, W)
    return _affine_matmul(w_eff, b_eff, bw_t, block_b=block_b)


# --------------------------------------------------------------------------
# Deterministic parameter init (shapes from the module's __init__).
# --------------------------------------------------------------------------
def init_params(key, H, W):
    ks = jax.random.split(key, 8)

    def u(k, shape, fan_in):
        bound = 1.0 / float(fan_in) ** 0.5
        return jax.random.uniform(k, shape, jnp.float32, -bound, bound)

    p = {
        "w1": u(ks[0], (3, 1, K, K), 1 * K * K),
        "b1": u(ks[1], (3,), 1 * K * K),
        "w2": u(ks[2], (3, 3, K, K), 3 * K * K),
        "b2": u(ks[3], (3,), 3 * K * K),
        "w3": u(ks[4], (3, 3, K, K), 3 * K * K),
        "b3": u(ks[5], (3,), 3 * K * K),
    }
    fin = 3 * H * W
    p["w_enc"] = u(ks[6], (fin, EMB), fin)
    p["b_enc"] = u(ks[7], (1, EMB), fin)
    return p


# --------------------------------------------------------------------------
# Pure-JAX reference for verification (same math, no folding, no Pallas).
# --------------------------------------------------------------------------
def ref_forward(x, params):
    if x.shape[1] == 3:
        x = x[:, 1:2, :, :]
    return _colorize_then_encode(x.astype(jnp.float32), params)


if __name__ == "__main__":
    key = jax.random.PRNGKey(0)
    kx, kp = jax.random.split(key)
    B, C, H, W = 2, 3, 16, 16
    x = jax.random.normal(kx, (B, C, H, W), jnp.float32)
    params = init_params(kp, H, W)

    out = tile_classifier_encoder_forward(x, params)
    out = jax.block_until_ready(out)

    ref = ref_forward(x, params)
    assert out.shape == (B, EMB), out.shape
    err = float(jnp.max(jnp.abs(out - ref)))
    assert jnp.allclose(out, ref, rtol=1e-3, atol=1e-3), err
    print("KERNEL_OK")
</pallas_src>

<mosaic_0001>
module attributes {stable_mosaic.version = 11 : i64} {
  func.func @_affine_kernel(%arg0: i32, %arg1: memref<32x256xf32, #tpu.memory_space<vmem>>, %arg2: memref<32x1xf32, #tpu.memory_space<vmem>>, %arg3: memref<256x2xf32, #tpu.memory_space<vmem>>, %arg4: memref<32x2xf32, #tpu.memory_space<vmem>>) attributes {dimension_semantics = [#tpu.dimension_semantics<parallel>], iteration_bounds = array<i64: 1>, scalar_prefetch = 0 : i64, scratch_operands = 0 : i64, tpu.core_type = #tpu.core_type<tc>, window_params = [{pipeline_mode = #tpu.pipeline_mode<synchronous>, transform_indices = @transform_0, window_bounds = array<i64: 32, 256>}, {pipeline_mode = #tpu.pipeline_mode<synchronous>, transform_indices = @transform_1, window_bounds = array<i64: 32, 1>}, {transform_indices = @transform_2, window_bounds = array<i64: 256, 2>}, {transform_indices = @transform_3, window_bounds = array<i64: 32, 2>}]} {
    %c0 = arith.constant 0 : index
    %c0_0 = arith.constant 0 : index
    %0 = vector.load %arg1[%c0, %c0_0] : memref<32x256xf32, #tpu.memory_space<vmem>>, vector<32x256xf32>
    %c0_1 = arith.constant 0 : index
    %c0_2 = arith.constant 0 : index
    %1 = vector.load %arg3[%c0_1, %c0_2] : memref<256x2xf32, #tpu.memory_space<vmem>>, vector<256x2xf32>
    %cst = arith.constant dense<0.000000e+00> : vector<32x2xf32>
    %2 = tpu.matmul %0, %1, %cst {dimension_numbers = #tpu.dot_dimension_numbers<[1], [0], [0], [1], [0, 0, 1, 1], [], []>} : vector<32x256xf32>, vector<256x2xf32>, vector<32x2xf32> -> vector<32x2xf32>
    %c0_3 = arith.constant 0 : index
    %c0_4 = arith.constant 0 : index
    %3 = vector.load %arg2[%c0_3, %c0_4] : memref<32x1xf32, #tpu.memory_space<vmem>>, vector<32x1xf32>
    %4 = vector.broadcast %3 : vector<32x1xf32> to vector<32x2xf32>
    %5 = arith.addf %2, %4 : vector<32x2xf32>
    %c0_5 = arith.constant 0 : index
    %c0_6 = arith.constant 0 : index
    %6 = vector.load %arg4[%c0_5, %c0_6] : memref<32x2xf32, #tpu.memory_space<vmem>>, vector<32x2xf32>
    tpu.vector_store %arg4[%c0_5, %c0_6], %5 {strides = array<i32>} : memref<32x2xf32, #tpu.memory_space<vmem>>, vector<32x2xf32>,
    return
  }
  func.func @transform_0(%arg0: i32) -> (i32, i32) {
    %c0_i32 = arith.constant 0 : i32
    %c0_i32_0 = arith.constant 0 : i32
    %c0_i32_1 = arith.constant 0 : i32
    return %c0_i32, %c0_i32_0 : i32, i32
  }
  func.func @transform_1(%arg0: i32) -> (i32, i32) {
    %c0_i32 = arith.constant 0 : i32
    %c0_i32_0 = arith.constant 0 : i32
    %c0_i32_1 = arith.constant 0 : i32
    return %c0_i32, %c0_i32_0 : i32, i32
  }
  func.func @transform_2(%arg0: i32) -> (i32, i32) {
    %c0_i32 = arith.constant 0 : i32
    %c0_i32_0 = arith.constant 0 : i32
    return %c0_i32, %arg0 : i32, i32
  }
  func.func @transform_3(%arg0: i32) -> (i32, i32) {
    %c0_i32 = arith.constant 0 : i32
    %c0_i32_0 = arith.constant 0 : i32
    return %c0_i32, %arg0 : i32, i32
  }
}

</mosaic_0001>

<llo_original>
// kernel: tpu_custom_call.1
$region0: #{tpu_custom_call.1}
  #allocation0 [shape = 'u32[]', space=smem, size = 0x4, offset = 0x4, fixed_abs, tag = 'smem constant byte address 0x4 - core index']
  #allocation1 [shape = 'u32[144,128]{1,0:T(1,128)}', space=vmem, size = 0x12000, scoped, tag = 'internal scratch']
  %s0 = inlined_call_operand.vmem [shape: f32[32,256], index: 0, kind: input, shape index: {}]
  %s1 = inlined_call_operand.vmem [shape: f32[32,1], index: 1, kind: input, shape index: {}]
  %s2 = inlined_call_operand.vmem [shape: f32[256,2], index: 2, kind: input, shape index: {}]
  %s3 = inlined_call_operand.vmem [shape: f32[32,2], index: 3, kind: output, shape index: {}]
  %s4 = sld [smem:[#allocation0]]
  $region22: #{tpu_custom_call.1} parent=0
    _
  %s6 = ssub.s32 1, %s4
  %s7 = scalar_select 0, %s6, %s4
  // Predicated region
  $region2: #{tpu_custom_call.1} parent=0 // pred_check
    _
  $region3: #{tpu_custom_call.1} parent=0 // pred_check_branch
    %9 = sbr.rel (0) target = $region5
  $region4: #{tpu_custom_call.1} parent=0 // pred_region
    _
  $region5: #{tpu_custom_call.1} parent=0 // pred_fallthru
    _
  // Predicated region
  $region6: #{tpu_custom_call.1} parent=0 // pred_check
    _
  $region7: #{tpu_custom_call.1} parent=0 // pred_check_branch
    %11 = sbr.rel (0) target = $region9
  $region8: #{tpu_custom_call.1} parent=0 // pred_region
    _
  $region9: #{tpu_custom_call.1} parent=0 // pred_fallthru
    _
  // Predicated region
  $region10: #{tpu_custom_call.1} parent=0 // pred_check
    _
  $region11: #{tpu_custom_call.1} parent=0 // pred_check_branch
    %13 = sbr.rel (0) target = $region13
  $region12: #{tpu_custom_call.1} parent=0 // pred_region
    _
  $region13: #{tpu_custom_call.1} parent=0 // pred_fallthru
    _
  %v14 = vld [vmem:[%s0] sm:$0xff]
  %v15 = vld [vmem:[%s0 + $0x8] sm:$0xff]
  %v16 = vld [vmem:[%s0 + $0x10] sm:$0xff]
  %v17 = vld [vmem:[%s0 + $0x18] sm:$0xff]
  %v18 = vld [vmem:[%s0 + $0x20] sm:$0xff]
  %v19 = vld [vmem:[%s0 + $0x28] sm:$0xff]
  %v20 = vld [vmem:[%s0 + $0x30] sm:$0xff]
  %v21 = vld [vmem:[%s0 + $0x38] sm:$0xff]
  %v22 = vld [vmem:[%s2] sm:$0xff]
  %v23 = vld [vmem:[%s2 + $0x8] sm:$0xff]
  %v24 = vld [vmem:[%s2 + $0x10] sm:$0xff]
  %v25 = vld [vmem:[%s2 + $0x18] sm:$0xff]
  %v26 = vld [vmem:[%s2 + $0x20] sm:$0xff]
  %v27 = vld [vmem:[%s2 + $0x28] sm:$0xff]
  %v28 = vld [vmem:[%s2 + $0x30] sm:$0xff]
  %v29 = vld [vmem:[%s2 + $0x38] sm:$0xff]
  %v30 = vld [vmem:[%s2 + $0x40] sm:$0xff]
  %v31 = vld [vmem:[%s2 + $0x48] sm:$0xff]
  %v32 = vld [vmem:[%s2 + $0x50] sm:$0xff]
  %v33 = vld [vmem:[%s2 + $0x58] sm:$0xff]
  %v34 = vld [vmem:[%s2 + $0x60] sm:$0xff]
  %v35 = vld [vmem:[%s2 + $0x68] sm:$0xff]
  %v36 = vld [vmem:[%s2 + $0x70] sm:$0xff]
  %v37 = vld [vmem:[%s2 + $0x78] sm:$0xff]
  %v38 = vld [vmem:[%s2 + $0x80] sm:$0xff]
  %v39 = vld [vmem:[%s2 + $0x88] sm:$0xff]
  %v40 = vld [vmem:[%s2 + $0x90] sm:$0xff]
  %v41 = vld [vmem:[%s2 + $0x98] sm:$0xff]
  %v42 = vld [vmem:[%s2 + $0xa0] sm:$0xff]
  %v43 = vld [vmem:[%s2 + $0xa8] sm:$0xff]
  %v44 = vld [vmem:[%s2 + $0xb0] sm:$0xff]
  %v45 = vld [vmem:[%s2 + $0xb8] sm:$0xff]
  %v46 = vld [vmem:[%s2 + $0xc0] sm:$0xff]
  %v47 = vld [vmem:[%s2 + $0xc8] sm:$0xff]
  %v48 = vld [vmem:[%s2 + $0xd0] sm:$0xff]
  %v49 = vld [vmem:[%s2 + $0xd8] sm:$0xff]
  %v50 = vld [vmem:[%s2 + $0xe0] sm:$0xff]
  %v51 = vld [vmem:[%s2 + $0xe8] sm:$0xff]
  %v52 = vld [vmem:[%s2 + $0xf0] sm:$0xff]
  %v53 = vld [vmem:[%s2 + $0xf8] sm:$0xff]
  %v54 = vld [vmem:[%s1] sm:$0xff]
  %v55 = vld [vmem:[%s1 + $0x8] sm:$0xff]
  %v56 = vld [vmem:[%s1 + $0x10] sm:$0xff]
  %v57 = vld [vmem:[%s1 + $0x18] sm:$0xff]
  %59 = vset.pattern.permute.xlu0 0
  %60 = vperm.xlu0 %59, %v54
  %v61 = vpop.permute.xlu0 %60
  %64 = vset.pattern.permute.xlu0 0
  %65 = vperm.xlu0 %64, %v55
  %v66 = vpop.permute.xlu0 %65
  %69 = vset.pattern.permute.xlu0 0
  %70 = vperm.xlu0 %69, %v56
  %v71 = vpop.permute.xlu0 %70
  %74 = vset.pattern.permute.xlu0 0
  %75 = vperm.xlu0 %74, %v57
  %v76 = vpop.permute.xlu0 %75
  %78 = vmatprep.subr.mxu0 0.0
  %79 = vmatpush1.msra.mxu0 %v22
  %80 = vmatprep.subr.mxu0 0.0
  %81 = vmatpush1.msra.mxu0 %v23
  %82 = vmatprep.subr.mxu0 0.0
  %83 = vmatpush1.msra.mxu0 %v24
  %84 = vmatprep.subr.mxu0 0.0
  %85 = vmatpush1.msra.mxu0 %v25
  %86 = vmatprep.subr.mxu0 0.0
  %87 = vmatpush1.msra.mxu0 %v26
  %88 = vmatprep.subr.mxu0 0.0
  %89 = vmatpush1.msra.mxu0 %v27
  %90 = vmatprep.subr.mxu0 0.0
  %91 = vmatpush1.msra.mxu0 %v28
  %92 = vmatprep.subr.mxu0 0.0
  %93 = vmatpush1.msra.mxu0 %v29
  %94 = vmatprep.subr.mxu0 0.0
  %95 = vmatpush1.msra.mxu0 %v30
  %96 = vmatprep.subr.mxu0 0.0
  %97 = vmatpush1.msra.mxu0 %v31
  %98 = vmatprep.subr.mxu0 0.0
  %99 = vmatpush1.msra.mxu0 %v32
  %100 = vmatprep.subr.mxu0 0.0
  %101 = vmatpush1.msra.mxu0 %v33
  %102 = vmatprep.subr.mxu0 0.0
  %103 = vmatpush1.msra.mxu0 %v34
  %104 = vmatprep.subr.mxu0 0.0
  %105 = vmatpush1.msra.mxu0 %v35
  %106 = vmatprep.subr.mxu0 0.0
  %107 = vmatpush1.msra.mxu0 %v36
  %108 = vmatprep.subr.mxu0 0.0
  %109 = vmatpush1.msra.mxu0 %v37
  %110 = vmatprep.subr.mxu0 0.0
  %111 = vmatpush1.msra.mxu0 %v38
  %112 = vmatprep.subr.mxu0 0.0
  %113 = vmatpush1.msra.mxu0 %v39
  %114 = vmatprep.subr.mxu0 0.0
  %115 = vmatpush1.msra.mxu0 %v40
  %116 = vmatprep.subr.mxu0 0.0
  %117 = vmatpush1.msra.mxu0 %v41
  %118 = vmatprep.subr.mxu0 0.0
  %119 = vmatpush1.msra.mxu0 %v42
  %120 = vmatprep.subr.mxu0 0.0
  %121 = vmatpush1.msra.mxu0 %v43
  %122 = vmatprep.subr.mxu0 0.0
  %123 = vmatpush1.msra.mxu0 %v44
  %124 = vmatprep.subr.mxu0 0.0
  %125 = vmatpush1.msra.mxu0 %v45
  %126 = vmatprep.subr.mxu0 0.0
  %127 = vmatpush1.msra.mxu0 %v46
  %128 = vmatprep.subr.mxu0 0.0
  %129 = vmatpush1.msra.mxu0 %v47
  %130 = vmatprep.subr.mxu0 0.0
  %131 = vmatpush1.msra.mxu0 %v48
  %132 = vmatprep.subr.mxu0 0.0
  %133 = vmatpush1.msra.mxu0 %v49
  %134 = vmatprep.subr.mxu0 0.0
  %135 = vmatpush1.msra.mxu0 %v50
  %136 = vmatprep.subr.mxu0 0.0
  %137 = vmatpush1.msra.mxu0 %v51
  %138 = vmatprep.subr.mxu0 0.0
  %139 = vmatpush1.msra.mxu0 %v52
  %140 = vmatprep.subr.mxu0 0.0
  %141 = vmatpush1.msra.mxu0 %v53
  %142 = vmatprep.mubr.f32.mxu0 %v15
  %143 = vmatmul.mubr.f32.gmra.mrb[0].mxu0 %v14
  %v144 = vpop.f32.mrb[0].mxu0
  %v145 = vadd.f32 %v61, %v144
  %v146 = vpop.f32.mrb[0].mxu0
  %147 = vmatprep.mubr.f32.mxu0 %v17
  %148 = vmatmul.mubr.f32.gmra.mrb[0].mxu0 %v16
  %v149 = vpop.f32.mrb[0].mxu0
  %v150 = vadd.f32 %v66, %v149
  %v151 = vpop.f32.mrb[0].mxu0
  %152 = vmatprep.mubr.f32.mxu0 %v19
  %153 = vmatmul.mubr.f32.gmra.mrb[0].mxu0 %v18
  %v154 = vpop.f32.mrb[0].mxu0
  %v155 = vadd.f32 %v71, %v154
  %v156 = vpop.f32.mrb[0].mxu0
  %157 = vmatprep.mubr.f32.mxu0 %v21
  %158 = vmatmul.mubr.f32.gmra.mrb[0].mxu0 %v20
  %v159 = vpop.f32.mrb[0].mxu0
  %v160 = vadd.f32 %v76, %v159
  %v161 = vpop.f32.mrb[0].mxu0
  %162 = vdwg.mxu0
  %vm163 = vcmask 15360
  %164 = vst.msk [vmem:[%s3] sm:$0xff] %vm163, %v145
  %165 = vst.msk [vmem:[%s3 + $0x8] sm:$0xff] %vm163, %v150
  %166 = vst.msk [vmem:[%s3 + $0x10] sm:$0xff] %vm163, %v155
  %167 = vst.msk [vmem:[%s3 + $0x18] sm:$0xff] %vm163, %v160
  // Predicated region
  $region14: #{tpu_custom_call.1} parent=0 // pred_check
    _
  $region15: #{tpu_custom_call.1} parent=0 // pred_check_branch
    %169 = sbr.rel (0) target = $region17
  $region16: #{tpu_custom_call.1} parent=0 // pred_region
    _
  $region17: #{tpu_custom_call.1} parent=0 // pred_fallthru
    _
  // Predicated region
  $region18: #{tpu_custom_call.1} parent=0 // pred_check
    _
  $region19: #{tpu_custom_call.1} parent=0 // pred_check_branch
    %171 = sbr.rel (0) target = $region21
  $region20: #{tpu_custom_call.1} parent=0 // pred_region
    _
  $region21: #{tpu_custom_call.1} parent=0 // pred_fallthru
    _

</llo_original>
